<compile_context>
chip_gen: v6e
topology: v6e:2x2x1
jax: 0.10.0
libtpu: 0.0.40
codegen_flags: <defaults>
</compile_context>

<pallas_src>
import functools

import numpy as np
import jax
import jax.numpy as jnp
from jax.experimental import pallas as pl
from jax.experimental.pallas import tpu as pltpu


def _n_windows(size, k, s):
    return (size - k) // s + 1


def _interp_nearest(mask, H, W):
    """torch.nn.functional.interpolate(..., size=(H, W), mode='nearest')."""
    # TODO(synk): nearest resize is a static index gather; kept as XLA glue.
    Hm, Wm = mask.shape[-2], mask.shape[-1]
    ridx = (jnp.arange(H) * Hm) // H
    cidx = (jnp.arange(W) * Wm) // W
    return mask[..., ridx, :][..., :, cidx]


def _masked_sliding_window_kernel(thr_ref, img_ref, msk_ref, patches_ref, keep_ref,
                                  *, kH, kW, sH, sW, nH, nW, M):
    """One batch element per grid step.

    thr_ref     : (M,)               f32 thresholds (SMEM scalars)
    img_ref     : (1, 1, H, W)       image plane (VMEM, W on lanes)
    msk_ref     : (1, M, H, W)       nearest-resized masks (VMEM, W on lanes)
    patches_ref : (1, nH*nW, kH, kW) unfolded image patches
    keep_ref    : (1, nH, nW)        int32 keep mask (all mask means above threshold)
    """
    # ---- unfold: copy each (kH, kW) window out of the lane-dense image plane ----
    for ih in range(nH):
        r0 = ih * sH
        band = img_ref[0, 0, r0:r0 + kH, :]                    # (kH, W) row band, reused
        for iw in range(nW):
            c0 = iw * sW
            patches_ref[0, ih * nW + iw, :, :] = band[:, c0:c0 + kW]

    # ---- per-window mask means + thresholds (VPU/XLU only, no MXU) ----
    inv = 1.0 / float(kH * kW)
    keep = None
    for m in range(M):
        # Row-band partial sums -> (nH, W): sublane reductions on dense lanes.
        rows = [
            jnp.sum(msk_ref[0, m, ih * sH:ih * sH + kH, :], axis=0, keepdims=True)
            for ih in range(nH)
        ]
        rsum = jnp.concatenate(rows, axis=0)                   # (nH, W)
        # Column-window sums -> (nH, nW): lane reductions per window.
        cols = [
            jnp.sum(rsum[:, iw * sW:iw * sW + kW], axis=1, keepdims=True)
            for iw in range(nW)
        ]
        wsum = jnp.concatenate(cols, axis=1)                   # (nH, nW)
        km = (wsum * inv) > thr_ref[m]                         # SMEM scalar broadcast
        keep = km if keep is None else jnp.logical_and(keep, km)

    keep_ref[0, :, :] = keep.astype(jnp.int32)


def masked_sliding_window_forward(image, masks, thresholds, label, *, kernel_size, stride):
    """NCHW image in; returns (patches, labels, batch_idx, keep_mask, n_kept)."""
    kH, kW = kernel_size if isinstance(kernel_size, tuple) else (kernel_size, kernel_size)
    sH, sW = stride if isinstance(stride, tuple) else (stride, stride)
    B, C, H, W = image.shape
    assert C == 1, "MaskedSlidingWindow's rearrange assumes single-channel images"
    nH = _n_windows(H, kH, sH)
    nW = _n_windows(W, kW, sW)
    M = len(masks)

    # Nearest-resize each mask to (H, W) and stack along a mask axis: (B, M, H, W).
    masks_i = jnp.stack(
        [_interp_nearest(m.astype(jnp.float32), H, W)[:, 0] for m in masks], axis=1)
    thr = jnp.asarray(thresholds, dtype=jnp.float32)

    kernel = functools.partial(
        _masked_sliding_window_kernel,
        kH=kH, kW=kW, sH=sH, sW=sW, nH=nH, nW=nW, M=M)

    patches_all, keep = pl.pallas_call(
        kernel,
        out_shape=(
            jax.ShapeDtypeStruct((B, nH * nW, kH, kW), image.dtype),
            jax.ShapeDtypeStruct((B, nH, nW), jnp.int32),
        ),
        grid=(B,),
        in_specs=[
            pl.BlockSpec(memory_space=pltpu.MemorySpace.SMEM),           # thresholds
            pl.BlockSpec((1, 1, H, W), lambda b: (b, 0, 0, 0)),          # image (W on lanes)
            pl.BlockSpec((1, M, H, W), lambda b: (b, 0, 0, 0)),          # masks (W on lanes)
        ],
        out_specs=(
            pl.BlockSpec((1, nH * nW, kH, kW), lambda b: (b, 0, 0, 0)),
            pl.BlockSpec((1, nH, nW), lambda b: (b, 0, 0)),
        ),
        compiler_params=pltpu.CompilerParams(dimension_semantics=("parallel",)),
    )(thr, image, masks_i)

    # Pure order-preserving reshape into the PyTorch patch layout (no transpose).
    patches_all = patches_all.reshape(B * nH * nW, 1, kH, kW)
    keep = keep.reshape(B * nH * nW).astype(bool)
    labels_all = jnp.repeat(label, nH * nW)
    batch_idx_all = jnp.repeat(jnp.arange(B, dtype=jnp.int32), nH * nW)

    # TODO(synk): `patches[keep]` has a data-dependent size; with static TPU shapes we
    # return all windows reordered kept-first plus n_kept (the valid prefix length).
    order = jnp.argsort(jnp.logical_not(keep), stable=True)
    n_kept = jnp.sum(keep.astype(jnp.int32))
    return patches_all[order], labels_all[order], batch_idx_all[order], keep, n_kept


def _forward_reference(image, masks, thresholds, label, *, kernel_size, stride):
    """Pure-JAX reference of the same forward pass (for the correctness check)."""
    kH, kW = kernel_size if isinstance(kernel_size, tuple) else (kernel_size, kernel_size)
    sH, sW = stride if isinstance(stride, tuple) else (stride, stride)
    B, C, H, W = image.shape
    nH = _n_windows(H, kH, sH)
    nW = _n_windows(W, kW, sW)
    windows = [(ih, iw) for ih in range(nH) for iw in range(nW)]

    masks_i = jnp.stack(
        [_interp_nearest(m.astype(jnp.float32), H, W)[:, 0] for m in masks], axis=1)

    patches = jnp.stack(
        [image[:, :, ih * sH:ih * sH + kH, iw * sW:iw * sW + kW] for ih, iw in windows],
        axis=1).reshape(B * nH * nW, C, kH, kW)

    keep = None
    for m in range(len(masks)):
        means = jnp.stack(
            [masks_i[:, m, ih * sH:ih * sH + kH, iw * sW:iw * sW + kW].mean(axis=(-1, -2))
             for ih, iw in windows], axis=1)
        km = means > float(thresholds[m])
        keep = km if keep is None else jnp.logical_and(keep, km)
    keep = keep.reshape(B * nH * nW)

    labels_all = jnp.repeat(label, nH * nW)
    batch_idx_all = jnp.repeat(jnp.arange(B, dtype=jnp.int32), nH * nW)
    order = jnp.argsort(jnp.logical_not(keep), stable=True)
    n_kept = jnp.sum(keep.astype(jnp.int32))
    return patches[order], labels_all[order], batch_idx_all[order], keep, n_kept


if __name__ == "__main__":
    key = jax.random.PRNGKey(0)
    k_img, k_m0, k_m1 = jax.random.split(key, 3)

    B, C, H, W = 2, 1, 16, 16
    kernel_size, stride = 8, 4
    image = jax.random.normal(k_img, (B, C, H, W), dtype=jnp.float32)
    # Low-resolution binary masks; the module nearest-resizes them to (H, W).
    masks = [
        (jax.random.uniform(k_m0, (B, 1, 8, 8)) > 0.4).astype(jnp.float32),
        (jax.random.uniform(k_m1, (B, 1, 8, 8)) > 0.3).astype(jnp.float32),
    ]
    thresholds = [0.4, 0.3]
    label = jnp.array([0, 1], dtype=jnp.int32)

    out = masked_sliding_window_forward(
        image, masks, thresholds, label, kernel_size=kernel_size, stride=stride)
    out = jax.block_until_ready(out)
    patches, labels, batch_idx, keep, n_kept = out

    nH = _n_windows(H, kernel_size, stride)
    nW = _n_windows(W, kernel_size, stride)
    assert patches.shape == (B * nH * nW, 1, kernel_size, kernel_size)
    assert labels.shape == (B * nH * nW,)
    assert batch_idx.shape == (B * nH * nW,)
    assert keep.shape == (B * nH * nW,)

    ref = _forward_reference(
        image, masks, thresholds, label, kernel_size=kernel_size, stride=stride)
    ref = jax.block_until_ready(ref)
    np.testing.assert_array_equal(np.asarray(keep), np.asarray(ref[3]))
    np.testing.assert_array_equal(np.asarray(patches), np.asarray(ref[0]))
    np.testing.assert_array_equal(np.asarray(labels), np.asarray(ref[1]))
    np.testing.assert_array_equal(np.asarray(batch_idx), np.asarray(ref[2]))
    assert int(n_kept) == int(ref[4])

    print("KERNEL_OK")
</pallas_src>

<mosaic_0001>
module attributes {stable_mosaic.version = 11 : i64} {
  func.func @_masked_sliding_window_kernel(%arg0: i32, %arg1: memref<2xf32, #tpu.memory_space<smem>>, %arg2: memref<1x1x16x16xf32, #tpu.memory_space<vmem>>, %arg3: memref<1x2x16x16xf32, #tpu.memory_space<vmem>>, %arg4: memref<1x9x8x8xf32, #tpu.memory_space<vmem>>, %arg5: memref<1x3x3xi32, #tpu.memory_space<vmem>>) attributes {dimension_semantics = [#tpu.dimension_semantics<parallel>], iteration_bounds = array<i64: 2>, scalar_prefetch = 0 : i64, scratch_operands = 0 : i64, tpu.core_type = #tpu.core_type<tc>, window_params = [{transform_indices = @transform_0, window_bounds = array<i64: 2>}, {transform_indices = @transform_1, window_bounds = array<i64: 1, 1, 16, 16>}, {transform_indices = @transform_2, window_bounds = array<i64: 1, 2, 16, 16>}, {transform_indices = @transform_3, window_bounds = array<i64: 1, 9, 8, 8>}, {transform_indices = @transform_4, window_bounds = array<i64: 1, 3, 3>}]} {
    %c0 = arith.constant 0 : index
    %c0_0 = arith.constant 0 : index
    %c0_1 = arith.constant 0 : index
    %c0_2 = arith.constant 0 : index
    %0 = vector.load %arg2[%c0, %c0_0, %c0_1, %c0_2] : memref<1x1x16x16xf32, #tpu.memory_space<vmem>>, vector<1x1x8x16xf32>
    %1 = vector.shape_cast %0 : vector<1x1x8x16xf32> to vector<8x16xf32>
    %2 = vector.extract_strided_slice %1 {offsets = [0, 0], sizes = [8, 8], strides = [1, 1]} : vector<8x16xf32> to vector<8x8xf32>
    %c0_3 = arith.constant 0 : index
    %c0_4 = arith.constant 0 : index
    %c0_5 = arith.constant 0 : index
    %c0_6 = arith.constant 0 : index
    %3 = vector.load %arg4[%c0_3, %c0_4, %c0_5, %c0_6] : memref<1x9x8x8xf32, #tpu.memory_space<vmem>>, vector<1x1x8x8xf32>
    %4 = vector.shape_cast %3 : vector<1x1x8x8xf32> to vector<8x8xf32>
    %5 = vector.shape_cast %2 : vector<8x8xf32> to vector<1x1x8x8xf32>
    tpu.vector_store %arg4[%c0_3, %c0_4, %c0_5, %c0_6], %5 {strides = array<i32>} : memref<1x9x8x8xf32, #tpu.memory_space<vmem>>, vector<1x1x8x8xf32>,
    %6 = vector.extract_strided_slice %1 {offsets = [0, 4], sizes = [8, 8], strides = [1, 1]} : vector<8x16xf32> to vector<8x8xf32>
    %c0_7 = arith.constant 0 : index
    %c1 = arith.constant 1 : index
    %c0_8 = arith.constant 0 : index
    %c0_9 = arith.constant 0 : index
    %7 = vector.load %arg4[%c0_7, %c1, %c0_8, %c0_9] : memref<1x9x8x8xf32, #tpu.memory_space<vmem>>, vector<1x1x8x8xf32>
    %8 = vector.shape_cast %7 : vector<1x1x8x8xf32> to vector<8x8xf32>
    %9 = vector.shape_cast %6 : vector<8x8xf32> to vector<1x1x8x8xf32>
    tpu.vector_store %arg4[%c0_7, %c1, %c0_8, %c0_9], %9 {strides = array<i32>} : memref<1x9x8x8xf32, #tpu.memory_space<vmem>>, vector<1x1x8x8xf32>,
    %10 = vector.extract_strided_slice %1 {offsets = [0, 8], sizes = [8, 8], strides = [1, 1]} : vector<8x16xf32> to vector<8x8xf32>
    %c0_10 = arith.constant 0 : index
    %c2 = arith.constant 2 : index
    %c0_11 = arith.constant 0 : index
    %c0_12 = arith.constant 0 : index
    %11 = vector.load %arg4[%c0_10, %c2, %c0_11, %c0_12] : memref<1x9x8x8xf32, #tpu.memory_space<vmem>>, vector<1x1x8x8xf32>
    %12 = vector.shape_cast %11 : vector<1x1x8x8xf32> to vector<8x8xf32>
    %13 = vector.shape_cast %10 : vector<8x8xf32> to vector<1x1x8x8xf32>
    tpu.vector_store %arg4[%c0_10, %c2, %c0_11, %c0_12], %13 {strides = array<i32>} : memref<1x9x8x8xf32, #tpu.memory_space<vmem>>, vector<1x1x8x8xf32>,
    %c0_13 = arith.constant 0 : index
    %c0_14 = arith.constant 0 : index
    %c4 = arith.constant 4 : index
    %c0_15 = arith.constant 0 : index
    %14 = vector.load %arg2[%c0_13, %c0_14, %c4, %c0_15] : memref<1x1x16x16xf32, #tpu.memory_space<vmem>>, vector<1x1x8x16xf32>
    %15 = vector.shape_cast %14 : vector<1x1x8x16xf32> to vector<8x16xf32>
    %16 = vector.extract_strided_slice %15 {offsets = [0, 0], sizes = [8, 8], strides = [1, 1]} : vector<8x16xf32> to vector<8x8xf32>
    %c0_16 = arith.constant 0 : index
    %c3 = arith.constant 3 : index
    %c0_17 = arith.constant 0 : index
    %c0_18 = arith.constant 0 : index
    %17 = vector.load %arg4[%c0_16, %c3, %c0_17, %c0_18] : memref<1x9x8x8xf32, #tpu.memory_space<vmem>>, vector<1x1x8x8xf32>
    %18 = vector.shape_cast %17 : vector<1x1x8x8xf32> to vector<8x8xf32>
    %19 = vector.shape_cast %16 : vector<8x8xf32> to vector<1x1x8x8xf32>
    tpu.vector_store %arg4[%c0_16, %c3, %c0_17, %c0_18], %19 {strides = array<i32>} : memref<1x9x8x8xf32, #tpu.memory_space<vmem>>, vector<1x1x8x8xf32>,
    %20 = vector.extract_strided_slice %15 {offsets = [0, 4], sizes = [8, 8], strides = [1, 1]} : vector<8x16xf32> to vector<8x8xf32>
    %c0_19 = arith.constant 0 : index
    %c4_20 = arith.constant 4 : index
    %c0_21 = arith.constant 0 : index
    %c0_22 = arith.constant 0 : index
    %21 = vector.load %arg4[%c0_19, %c4_20, %c0_21, %c0_22] : memref<1x9x8x8xf32, #tpu.memory_space<vmem>>, vector<1x1x8x8xf32>
    %22 = vector.shape_cast %21 : vector<1x1x8x8xf32> to vector<8x8xf32>
    %23 = vector.shape_cast %20 : vector<8x8xf32> to vector<1x1x8x8xf32>
    tpu.vector_store %arg4[%c0_19, %c4_20, %c0_21, %c0_22], %23 {strides = array<i32>} : memref<1x9x8x8xf32, #tpu.memory_space<vmem>>, vector<1x1x8x8xf32>,
    %24 = vector.extract_strided_slice %15 {offsets = [0, 8], sizes = [8, 8], strides = [1, 1]} : vector<8x16xf32> to vector<8x8xf32>
    %c0_23 = arith.constant 0 : index
    %c5 = arith.constant 5 : index
    %c0_24 = arith.constant 0 : index
    %c0_25 = arith.constant 0 : index
    %25 = vector.load %arg4[%c0_23, %c5, %c0_24, %c0_25] : memref<1x9x8x8xf32, #tpu.memory_space<vmem>>, vector<1x1x8x8xf32>
    %26 = vector.shape_cast %25 : vector<1x1x8x8xf32> to vector<8x8xf32>
    %27 = vector.shape_cast %24 : vector<8x8xf32> to vector<1x1x8x8xf32>
    tpu.vector_store %arg4[%c0_23, %c5, %c0_24, %c0_25], %27 {strides = array<i32>} : memref<1x9x8x8xf32, #tpu.memory_space<vmem>>, vector<1x1x8x8xf32>,
    %c0_26 = arith.constant 0 : index
    %c0_27 = arith.constant 0 : index
    %c8 = arith.constant 8 : index
    %c0_28 = arith.constant 0 : index
    %28 = vector.load %arg2[%c0_26, %c0_27, %c8, %c0_28] : memref<1x1x16x16xf32, #tpu.memory_space<vmem>>, vector<1x1x8x16xf32>
    %29 = vector.shape_cast %28 : vector<1x1x8x16xf32> to vector<8x16xf32>
    %30 = vector.extract_strided_slice %29 {offsets = [0, 0], sizes = [8, 8], strides = [1, 1]} : vector<8x16xf32> to vector<8x8xf32>
    %c0_29 = arith.constant 0 : index
    %c6 = arith.constant 6 : index
    %c0_30 = arith.constant 0 : index
    %c0_31 = arith.constant 0 : index
    %31 = vector.load %arg4[%c0_29, %c6, %c0_30, %c0_31] : memref<1x9x8x8xf32, #tpu.memory_space<vmem>>, vector<1x1x8x8xf32>
    %32 = vector.shape_cast %31 : vector<1x1x8x8xf32> to vector<8x8xf32>
    %33 = vector.shape_cast %30 : vector<8x8xf32> to vector<1x1x8x8xf32>
    tpu.vector_store %arg4[%c0_29, %c6, %c0_30, %c0_31], %33 {strides = array<i32>} : memref<1x9x8x8xf32, #tpu.memory_space<vmem>>, vector<1x1x8x8xf32>,
    %34 = vector.extract_strided_slice %29 {offsets = [0, 4], sizes = [8, 8], strides = [1, 1]} : vector<8x16xf32> to vector<8x8xf32>
    %c0_32 = arith.constant 0 : index
    %c7 = arith.constant 7 : index
    %c0_33 = arith.constant 0 : index
    %c0_34 = arith.constant 0 : index
    %35 = vector.load %arg4[%c0_32, %c7, %c0_33, %c0_34] : memref<1x9x8x8xf32, #tpu.memory_space<vmem>>, vector<1x1x8x8xf32>
    %36 = vector.shape_cast %35 : vector<1x1x8x8xf32> to vector<8x8xf32>
    %37 = vector.shape_cast %34 : vector<8x8xf32> to vector<1x1x8x8xf32>
    tpu.vector_store %arg4[%c0_32, %c7, %c0_33, %c0_34], %37 {strides = array<i32>} : memref<1x9x8x8xf32, #tpu.memory_space<vmem>>, vector<1x1x8x8xf32>,
    %38 = vector.extract_strided_slice %29 {offsets = [0, 8], sizes = [8, 8], strides = [1, 1]} : vector<8x16xf32> to vector<8x8xf32>
    %c0_35 = arith.constant 0 : index
    %c8_36 = arith.constant 8 : index
    %c0_37 = arith.constant 0 : index
    %c0_38 = arith.constant 0 : index
    %39 = vector.load %arg4[%c0_35, %c8_36, %c0_37, %c0_38] : memref<1x9x8x8xf32, #tpu.memory_space<vmem>>, vector<1x1x8x8xf32>
    %40 = vector.shape_cast %39 : vector<1x1x8x8xf32> to vector<8x8xf32>
    %41 = vector.shape_cast %38 : vector<8x8xf32> to vector<1x1x8x8xf32>
    tpu.vector_store %arg4[%c0_35, %c8_36, %c0_37, %c0_38], %41 {strides = array<i32>} : memref<1x9x8x8xf32, #tpu.memory_space<vmem>>, vector<1x1x8x8xf32>,
    %c0_39 = arith.constant 0 : index
    %c0_40 = arith.constant 0 : index
    %c0_41 = arith.constant 0 : index
    %c0_42 = arith.constant 0 : index
    %42 = vector.load %arg3[%c0_39, %c0_40, %c0_41, %c0_42] : memref<1x2x16x16xf32, #tpu.memory_space<vmem>>, vector<1x1x8x16xf32>
    %43 = vector.shape_cast %42 : vector<1x1x8x16xf32> to vector<8x16xf32>
    %cst = arith.constant dense<0.000000e+00> : vector<16xf32>
    %44 = vector.multi_reduction <add>, %43, %cst [0] : vector<8x16xf32> to vector<16xf32>
    %45 = vector.shape_cast %44 : vector<16xf32> to vector<1x16xf32>
    %c0_43 = arith.constant 0 : index
    %c0_44 = arith.constant 0 : index
    %c4_45 = arith.constant 4 : index
    %c0_46 = arith.constant 0 : index
    %46 = vector.load %arg3[%c0_43, %c0_44, %c4_45, %c0_46] : memref<1x2x16x16xf32, #tpu.memory_space<vmem>>, vector<1x1x8x16xf32>
    %47 = vector.shape_cast %46 : vector<1x1x8x16xf32> to vector<8x16xf32>
    %cst_47 = arith.constant dense<0.000000e+00> : vector<16xf32>
    %48 = vector.multi_reduction <add>, %47, %cst_47 [0] : vector<8x16xf32> to vector<16xf32>
    %49 = vector.shape_cast %48 : vector<16xf32> to vector<1x16xf32>
    %c0_48 = arith.constant 0 : index
    %c0_49 = arith.constant 0 : index
    %c8_50 = arith.constant 8 : index
    %c0_51 = arith.constant 0 : index
    %50 = vector.load %arg3[%c0_48, %c0_49, %c8_50, %c0_51] : memref<1x2x16x16xf32, #tpu.memory_space<vmem>>, vector<1x1x8x16xf32>
    %51 = vector.shape_cast %50 : vector<1x1x8x16xf32> to vector<8x16xf32>
    %cst_52 = arith.constant dense<0.000000e+00> : vector<16xf32>
    %52 = vector.multi_reduction <add>, %51, %cst_52 [0] : vector<8x16xf32> to vector<16xf32>
    %53 = vector.shape_cast %52 : vector<16xf32> to vector<1x16xf32>
    %54 = tpu.concatenate %45, %49, %53 in 0 : vector<1x16xf32>, vector<1x16xf32>, vector<1x16xf32> -> vector<3x16xf32>
    %55 = vector.extract_strided_slice %54 {offsets = [0, 0], sizes = [3, 8], strides = [1, 1]} : vector<3x16xf32> to vector<3x8xf32>
    %cst_53 = arith.constant dense<0.000000e+00> : vector<3xf32>
    %56 = vector.multi_reduction <add>, %55, %cst_53 [1] : vector<3x8xf32> to vector<3xf32>
    %57 = vector.shape_cast %56 : vector<3xf32> to vector<3x1xf32>
    %58 = vector.extract_strided_slice %54 {offsets = [0, 4], sizes = [3, 8], strides = [1, 1]} : vector<3x16xf32> to vector<3x8xf32>
    %cst_54 = arith.constant dense<0.000000e+00> : vector<3xf32>
    %59 = vector.multi_reduction <add>, %58, %cst_54 [1] : vector<3x8xf32> to vector<3xf32>
    %60 = vector.shape_cast %59 : vector<3xf32> to vector<3x1xf32>
    %61 = vector.extract_strided_slice %54 {offsets = [0, 8], sizes = [3, 8], strides = [1, 1]} : vector<3x16xf32> to vector<3x8xf32>
    %cst_55 = arith.constant dense<0.000000e+00> : vector<3xf32>
    %62 = vector.multi_reduction <add>, %61, %cst_55 [1] : vector<3x8xf32> to vector<3xf32>
    %63 = vector.shape_cast %62 : vector<3xf32> to vector<3x1xf32>
    %64 = tpu.concatenate %57, %60, %63 in 1 : vector<3x1xf32>, vector<3x1xf32>, vector<3x1xf32> -> vector<3x3xf32>
    %cst_56 = arith.constant 1.562500e-02 : f32
    %65 = vector.broadcast %cst_56 : f32 to vector<3x3xf32>
    %66 = arith.mulf %64, %65 : vector<3x3xf32>
    %c0_57 = arith.constant 0 : index
    %67 = memref.load %arg1[%c0_57] : memref<2xf32, #tpu.memory_space<smem>>
    %68 = vector.broadcast %67 : f32 to vector<3x3xf32>
    %69 = arith.cmpf ogt, %66, %68 : vector<3x3xf32>
    %c0_58 = arith.constant 0 : index
    %c1_59 = arith.constant 1 : index
    %c0_60 = arith.constant 0 : index
    %c0_61 = arith.constant 0 : index
    %70 = vector.load %arg3[%c0_58, %c1_59, %c0_60, %c0_61] : memref<1x2x16x16xf32, #tpu.memory_space<vmem>>, vector<1x1x8x16xf32>
    %71 = vector.shape_cast %70 : vector<1x1x8x16xf32> to vector<8x16xf32>
    %cst_62 = arith.constant dense<0.000000e+00> : vector<16xf32>
    %72 = vector.multi_reduction <add>, %71, %cst_62 [0] : vector<8x16xf32> to vector<16xf32>
    %73 = vector.shape_cast %72 : vector<16xf32> to vector<1x16xf32>
    %c0_63 = arith.constant 0 : index
    %c1_64 = arith.constant 1 : index
    %c4_65 = arith.constant 4 : index
    %c0_66 = arith.constant 0 : index
    %74 = vector.load %arg3[%c0_63, %c1_64, %c4_65, %c0_66] : memref<1x2x16x16xf32, #tpu.memory_space<vmem>>, vector<1x1x8x16xf32>
    %75 = vector.shape_cast %74 : vector<1x1x8x16xf32> to vector<8x16xf32>
    %cst_67 = arith.constant dense<0.000000e+00> : vector<16xf32>
    %76 = vector.multi_reduction <add>, %75, %cst_67 [0] : vector<8x16xf32> to vector<16xf32>
    %77 = vector.shape_cast %76 : vector<16xf32> to vector<1x16xf32>
    %c0_68 = arith.constant 0 : index
    %c1_69 = arith.constant 1 : index
    %c8_70 = arith.constant 8 : index
    %c0_71 = arith.constant 0 : index
    %78 = vector.load %arg3[%c0_68, %c1_69, %c8_70, %c0_71] : memref<1x2x16x16xf32, #tpu.memory_space<vmem>>, vector<1x1x8x16xf32>
    %79 = vector.shape_cast %78 : vector<1x1x8x16xf32> to vector<8x16xf32>
    %cst_72 = arith.constant dense<0.000000e+00> : vector<16xf32>
    %80 = vector.multi_reduction <add>, %79, %cst_72 [0] : vector<8x16xf32> to vector<16xf32>
    %81 = vector.shape_cast %80 : vector<16xf32> to vector<1x16xf32>
    %82 = tpu.concatenate %73, %77, %81 in 0 : vector<1x16xf32>, vector<1x16xf32>, vector<1x16xf32> -> vector<3x16xf32>
    %83 = vector.extract_strided_slice %82 {offsets = [0, 0], sizes = [3, 8], strides = [1, 1]} : vector<3x16xf32> to vector<3x8xf32>
    %cst_73 = arith.constant dense<0.000000e+00> : vector<3xf32>
    %84 = vector.multi_reduction <add>, %83, %cst_73 [1] : vector<3x8xf32> to vector<3xf32>
    %85 = vector.shape_cast %84 : vector<3xf32> to vector<3x1xf32>
    %86 = vector.extract_strided_slice %82 {offsets = [0, 4], sizes = [3, 8], strides = [1, 1]} : vector<3x16xf32> to vector<3x8xf32>
    %cst_74 = arith.constant dense<0.000000e+00> : vector<3xf32>
    %87 = vector.multi_reduction <add>, %86, %cst_74 [1] : vector<3x8xf32> to vector<3xf32>
    %88 = vector.shape_cast %87 : vector<3xf32> to vector<3x1xf32>
    %89 = vector.extract_strided_slice %82 {offsets = [0, 8], sizes = [3, 8], strides = [1, 1]} : vector<3x16xf32> to vector<3x8xf32>
    %cst_75 = arith.constant dense<0.000000e+00> : vector<3xf32>
    %90 = vector.multi_reduction <add>, %89, %cst_75 [1] : vector<3x8xf32> to vector<3xf32>
    %91 = vector.shape_cast %90 : vector<3xf32> to vector<3x1xf32>
    %92 = tpu.concatenate %85, %88, %91 in 1 : vector<3x1xf32>, vector<3x1xf32>, vector<3x1xf32> -> vector<3x3xf32>
    %cst_76 = arith.constant 1.562500e-02 : f32
    %93 = vector.broadcast %cst_76 : f32 to vector<3x3xf32>
    %94 = arith.mulf %92, %93 : vector<3x3xf32>
    %c1_77 = arith.constant 1 : index
    %95 = memref.load %arg1[%c1_77] : memref<2xf32, #tpu.memory_space<smem>>
    %96 = vector.broadcast %95 : f32 to vector<3x3xf32>
    %97 = arith.cmpf ogt, %94, %96 : vector<3x3xf32>
    %98 = arith.andi %69, %97 : vector<3x3xi1>
    %99 = arith.extui %98 : vector<3x3xi1> to vector<3x3xi32>
    %c0_78 = arith.constant 0 : index
    %c0_79 = arith.constant 0 : index
    %c0_80 = arith.constant 0 : index
    %100 = vector.load %arg5[%c0_78, %c0_79, %c0_80] : memref<1x3x3xi32, #tpu.memory_space<vmem>>, vector<1x3x3xi32>
    %101 = vector.shape_cast %100 : vector<1x3x3xi32> to vector<3x3xi32>
    %102 = vector.shape_cast %99 : vector<3x3xi32> to vector<1x3x3xi32>
    tpu.vector_store %arg5[%c0_78, %c0_79, %c0_80], %102 {strides = array<i32>} : memref<1x3x3xi32, #tpu.memory_space<vmem>>, vector<1x3x3xi32>,
    return
  }
  func.func @transform_0(%arg0: i32) -> i32 {
    %c0_i32 = arith.constant 0 : i32
    %c0_i32_0 = arith.constant 0 : i32
    return %c0_i32 : i32
  }
  func.func @transform_1(%arg0: i32) -> (i32, i32, i32, i32) {
    %c0_i32 = arith.constant 0 : i32
    %c0_i32_0 = arith.constant 0 : i32
    %c0_i32_1 = arith.constant 0 : i32
    %c0_i32_2 = arith.constant 0 : i32
    return %arg0, %c0_i32, %c0_i32_0, %c0_i32_1 : i32, i32, i32, i32
  }
  func.func @transform_2(%arg0: i32) -> (i32, i32, i32, i32) {
    %c0_i32 = arith.constant 0 : i32
    %c0_i32_0 = arith.constant 0 : i32
    %c0_i32_1 = arith.constant 0 : i32
    %c0_i32_2 = arith.constant 0 : i32
    return %arg0, %c0_i32, %c0_i32_0, %c0_i32_1 : i32, i32, i32, i32
  }
  func.func @transform_3(%arg0: i32) -> (i32, i32, i32, i32) {
    %c0_i32 = arith.constant 0 : i32
    %c0_i32_0 = arith.constant 0 : i32
    %c0_i32_1 = arith.constant 0 : i32
    %c0_i32_2 = arith.constant 0 : i32
    return %arg0, %c0_i32, %c0_i32_0, %c0_i32_1 : i32, i32, i32, i32
  }
  func.func @transform_4(%arg0: i32) -> (i32, i32, i32) {
    %c0_i32 = arith.constant 0 : i32
    %c0_i32_0 = arith.constant 0 : i32
    %c0_i32_1 = arith.constant 0 : i32
    return %arg0, %c0_i32, %c0_i32_0 : i32, i32, i32
  }
}

</mosaic_0001>

<llo_original>
// kernel: tpu_custom_call.1
$region0: #{tpu_custom_call.1}
  #allocation0 [shape = 'u32[]', space=smem, size = 0x4, offset = 0x4, fixed_abs, tag = 'smem constant byte address 0x4 - core index']
  #allocation1 [shape = 'u32[144,128]{1,0:T(1,128)}', space=vmem, size = 0x12000, scoped, tag = 'internal scratch']
  %s0 = inlined_call_operand.hbm [shape: f32[2], index: 0, kind: input, shape index: {}]
  %s1 = inlined_call_operand.hbm [shape: f32[2,1,16,16], index: 1, kind: input, shape index: {}]
  %s2 = inlined_call_operand.hbm [shape: f32[2,2,16,16], index: 2, kind: input, shape index: {}]
  %s3 = inlined_call_operand.vmem [shape: f32[2,9,8,8], index: 3, kind: output, shape index: {0}]
  %s4 = inlined_call_operand.vmem [shape: s32[2,3,3], index: 4, kind: output, shape index: {1}]
  %5 = xla_tuple %s3, %s4
  %s6 = sld [smem:[#allocation0]]
  $region65: #{tpu_custom_call.1} parent=0
    _
  %s8 = ssub.s32 1, %s6
  %s9 = scalar_select 0, %s8, %s6
  $region1: #{tpu_custom_call.1} parent=0
    #allocation2 [shape = 'u8[512]{0}', space=smem, size = 0x200, scoped, tag = 'input window, operand 0, single buffered']
    #allocation3 [shape = 's32[2]{0}', space=sflag, size = 0x8, scoped, tag = 'scoped memory for tpu_custom_call.1']
    #allocation4 [shape = 's32[2]{0}', space=sflag, size = 0x8, scoped, tag = 'scoped memory for tpu_custom_call.1']
    #allocation5 [shape = 'u8[16384]{0}', space=vmem, size = 0x4000, scoped, tag = 'input window, operand 1']
    #allocation6 [shape = 'u8[32768]{0}', space=vmem, size = 0x8000, scoped, tag = 'input window, operand 2']
    #allocation7 [shape = 's32[2]{0}', space=sflag, size = 0x8, scoped, tag = 'scoped memory for tpu_custom_call.1']
    %10 = vsyncpa [#allocation4], 0
    %11 = vsyncpa [#allocation3], 0
    %s12 = scalar_lea.sflag [#allocation3], 1
    %13 = vsyncpa %s12, 0
    %14 = vsyncpa [#allocation7], 0
    %s15 = scalar_lea.sflag [#allocation7], 1
    %16 = vsyncpa %s15, 0
    loop: start=0, step=1, limit=4
    $region2: #{tpu_custom_call.1} parent=1 // loop_pre_header
      _
    $region3: #{tpu_custom_call.1} parent=1 // loop_header
      %s18 = sphi 0, %s22
      %p19 = scmp.ge.s32.totalorder %s18, 4
      %s26 = sphi 0, %s26
      %s28 = sphi 0, %s26
      %s29 = sphi 0, %s28
      %s43 = sphi 0, %s29
      %s49 = sphi 0, %s51
      %s52 = sphi 0, %s49
      %s53 = sphi 0, %s52
      %s69 = sphi 0, %s53
      %s75 = sphi 0, %s77
      %s78 = sphi 0, %s75
      %s79 = sphi 0, %s78
      %s95 = sphi 0, %s79
      %s101 = sphi 0, %s103
      %s104 = sphi 0, %s101
      %s105 = sphi 0, %s104
      %s121 = sphi 0, %s105
      %s127 = sphi 0, %s129
      %s130 = sphi 0, %s127
      %s131 = sphi 0, %s130
      %s147 = sphi 0, %s131
    $region4: #{tpu_custom_call.1} parent=1 // loop_header_branch
      %21 = sbr.rel (%p19) target = $region8
    $region5: #{tpu_custom_call.1} parent=1 // loop_body
      %s23 = ssub.s32 %s18, 1
      %s24 = ssub.s32 %s18, 2
      %s25 = sadd.s32 %s18, 1
      %s27 = sadd.s32 %s26, 1
      %p30 = scmp.eq.s32.totalorder %s18, 1
      %p31 = scmp.ne.s32.totalorder %s26, %s28
      %p32 = scmp.eq.s32.totalorder %s18, 0
      %p33 = por %p31, %p32
      %p34 = scmp.ne.s32.totalorder %s26, %s28
      %p35 = scmp.eq.s32.totalorder %s23, 1
      %p36 = por %p34, %p35
      %p37 = scmp.ne.s32.totalorder %s28, %s29
      %p38 = scmp.eq.s32.totalorder %s23, 0
      %p39 = por %p37, %p38
      %p40 = scmp.ne.s32.totalorder %s28, %s29
      %p41 = scmp.eq.s32.totalorder %s24, 1
      %p42 = por %p40, %p41
      %p44 = scmp.ne.s32.totalorder %s29, %s43
      %p45 = scmp.eq.s32.totalorder %s24, 0
      %p46 = por %p44, %p45
      %s47 = ssub.s32 %s18, %s25
      %p48 = scmp.eq.s32.totalorder %s47, 0
      %s50 = sadd.s32 %s49, 1
      %s51 = scalar_select %p48, %s49, %s50
      %p54 = pneg %p48
      %p55 = scmp.eq.s32.totalorder %s18, 1
      %p56 = por %p54, %p55
      %p57 = scmp.ne.s32.totalorder %s49, %s52
      %p58 = scmp.eq.s32.totalorder %s18, 0
      %p59 = por %p57, %p58
      %p60 = scmp.ne.s32.totalorder %s49, %s52
      %p61 = scmp.eq.s32.totalorder %s23, 1
      %p62 = por %p60, %p61
      %p63 = scmp.ne.s32.totalorder %s52, %s53
      %p64 = scmp.eq.s32.totalorder %s23, 0
      %p65 = por %p63, %p64
      %p66 = scmp.ne.s32.totalorder %s52, %s53
      %p67 = scmp.eq.s32.totalorder %s24, 1
      %p68 = por %p66, %p67
      %p70 = scmp.ne.s32.totalorder %s53, %s69
      %p71 = scmp.eq.s32.totalorder %s24, 0
      %p72 = por %p70, %p71
      %s73 = ssub.s32 %s18, %s25
      %p74 = scmp.eq.s32.totalorder %s73, 0
      %s76 = sadd.s32 %s75, 1
      %s77 = scalar_select %p74, %s75, %s76
      %p80 = pneg %p74
      %p81 = scmp.eq.s32.totalorder %s18, 1
      %p82 = por %p80, %p81
      %p83 = scmp.ne.s32.totalorder %s75, %s78
      %p84 = scmp.eq.s32.totalorder %s18, 0
      %p85 = por %p83, %p84
      %p86 = scmp.ne.s32.totalorder %s75, %s78
      %p87 = scmp.eq.s32.totalorder %s23, 1
      %p88 = por %p86, %p87
      %p89 = scmp.ne.s32.totalorder %s78, %s79
      %p90 = scmp.eq.s32.totalorder %s23, 0
      %p91 = por %p89, %p90
      %p92 = scmp.ne.s32.totalorder %s78, %s79
      %p93 = scmp.eq.s32.totalorder %s24, 1
      %p94 = por %p92, %p93
      %p96 = scmp.ne.s32.totalorder %s79, %s95
      %p97 = scmp.eq.s32.totalorder %s24, 0
      %p98 = por %p96, %p97
      %s99 = ssub.s32 %s18, %s25
      %p100 = scmp.eq.s32.totalorder %s99, 0
      %s102 = sadd.s32 %s101, 1
      %s103 = scalar_select %p100, %s101, %s102
      %p106 = pneg %p100
      %p107 = scmp.eq.s32.totalorder %s18, 1
      %p108 = por %p106, %p107
      %p109 = scmp.ne.s32.totalorder %s101, %s104
      %p110 = scmp.eq.s32.totalorder %s18, 0
      %p111 = por %p109, %p110
      %p112 = scmp.ne.s32.totalorder %s101, %s104
      %p113 = scmp.eq.s32.totalorder %s23, 1
      %p114 = por %p112, %p113
      %p115 = scmp.ne.s32.totalorder %s104, %s105
      %p116 = scmp.eq.s32.totalorder %s23, 0
      %p117 = por %p115, %p116
      %p118 = scmp.ne.s32.totalorder %s104, %s105
      %p119 = scmp.eq.s32.totalorder %s24, 1
      %p120 = por %p118, %p119
      %p122 = scmp.ne.s32.totalorder %s105, %s121
      %p123 = scmp.eq.s32.totalorder %s24, 0
      %p124 = por %p122, %p123
      %s125 = ssub.s32 %s18, %s25
      %p126 = scmp.eq.s32.totalorder %s125, 0
      %s128 = sadd.s32 %s127, 1
      %s129 = scalar_select %p126, %s127, %s128
      %p132 = pneg %p126
      %p133 = scmp.eq.s32.totalorder %s18, 1
      %p134 = por %p132, %p133
      %p135 = scmp.ne.s32.totalorder %s127, %s130
      %p136 = scmp.eq.s32.totalorder %s18, 0
      %p137 = por %p135, %p136
      %p138 = scmp.ne.s32.totalorder %s127, %s130
      %p139 = scmp.eq.s32.totalorder %s23, 1
      %p140 = por %p138, %p139
      %p141 = scmp.ne.s32.totalorder %s130, %s131
      %p142 = scmp.eq.s32.totalorder %s23, 0
      %p143 = por %p141, %p142
      %p144 = scmp.ne.s32.totalorder %s130, %s131
      %p145 = scmp.eq.s32.totalorder %s24, 1
      %p146 = por %p144, %p145
      %p148 = scmp.ne.s32.totalorder %s131, %s147
      %p149 = scmp.eq.s32.totalorder %s24, 0
      %p150 = por %p148, %p149
      %p151 = scmp.le.s32.totalorder 1, %s18
      %p152 = scmp.lt.s32.totalorder %s18, 3
      %p153 = pnand %p151, %p152
      %p154 = pneg %p153
      // Predicated region
      $region9: #{tpu_custom_call.1} parent=5 // pred_check
        _
      $region10: #{tpu_custom_call.1} parent=5 // pred_check_branch
        %156 = sbr.rel (%p153) target = $region12
      $region11: #{tpu_custom_call.1} parent=5 // pred_region
        %s157 = ssub.s32 %s18, 1
        // Predicated region
        $region13: #{tpu_custom_call.1} parent=11 // pred_check
          %p158 = pneg %p39
        $region14: #{tpu_custom_call.1} parent=11 // pred_check_branch
          %160 = sbr.rel (%p158) target = $region16
        $region15: #{tpu_custom_call.1} parent=11 // pred_region
          %s162 = ssub.s32 16, 16
          %163 = vsyncadd [#allocation4], %s162
          %166 = dma.hbm_to_smem %s0, 16, [#allocation2], [#allocation4]
        $region16: #{tpu_custom_call.1} parent=11 // pred_fallthru
          _
      $region12: #{tpu_custom_call.1} parent=5 // pred_fallthru
        _
      %p167 = scmp.lt.s32.totalorder %s18, 2
      // Predicated region
      $region17: #{tpu_custom_call.1} parent=5 // pred_check
        %p168 = pneg %p167
      $region18: #{tpu_custom_call.1} parent=5 // pred_check_branch
        %170 = sbr.rel (%p168) target = $region20
      $region19: #{tpu_custom_call.1} parent=5 // pred_region
        // Predicated region
        $region21: #{tpu_custom_call.1} parent=19 // pred_check
          %p171 = pneg %p59
        $region22: #{tpu_custom_call.1} parent=19 // pred_check_branch
          %173 = sbr.rel (%p171) target = $region24
        $region23: #{tpu_custom_call.1} parent=19 // pred_region
          %s174 = sand.u32 %s49, 1
          %s175 = scalar_lea.sflag [#allocation3], %s174
          %s176 = sand.u32 %s49, 1
          %s177 = smul.addr %s176, 16
          %s178 = scalar_lea.vmem [#allocation5], %s177
          %s180 = ssub.s32 256, 256
          %181 = vsyncadd %s175, %s180
          %s182 = smul.addr %s18, 2
          %s183 = smul.addr %s182, 128
          %s184 = scalar_lea.hbm %s1, %s183
          %s185 = sshll.u32 %s178, 4
          %s186 = int_to_ptr.vmem [resolvable:$true] %s185
          %191 = dma.hbm_to_vmem [thread:$0]  %s184, 256, %s186, %s175, 128, 128, 8
        $region24: #{tpu_custom_call.1} parent=19 // pred_fallthru
          _
        // Predicated region
        $region25: #{tpu_custom_call.1} parent=19 // pred_check
          %p192 = pneg %p85
        $region26: #{tpu_custom_call.1} parent=19 // pred_check_branch
          %194 = sbr.rel (%p192) target = $region28
        $region27: #{tpu_custom_call.1} parent=19 // pred_region
          %s195 = sand.u32 %s75, 1
          %s196 = scalar_lea.sflag [#allocation7], %s195
          %s197 = sand.u32 %s75, 1
          %s198 = smul.addr %s197, 32
          %s199 = scalar_lea.vmem [#allocation6], %s198
          %s201 = ssub.s32 512, 512
          %202 = vsyncadd %s196, %s201
          %s203 = smul.addr %s18, 4
          %s204 = smul.addr %s203, 128
          %s205 = scalar_lea.hbm %s2, %s204
          %s206 = sshll.u32 %s199, 4
          %s207 = int_to_ptr.vmem [resolvable:$true] %s206
          %212 = dma.hbm_to_vmem [thread:$0]  %s205, 512, %s207, %s196, 128, 128, 8
        $region28: #{tpu_custom_call.1} parent=19 // pred_fallthru
          _
      $region20: #{tpu_custom_call.1} parent=5 // pred_fallthru
        _
      %p213 = scmp.le.s32.totalorder 1, %s18
      %p214 = scmp.lt.s32.totalorder %s18, 3
      %p215 = pnand %p213, %p214
      %p216 = pneg %p215
      // Predicated region
      $region29: #{tpu_custom_call.1} parent=5 // pred_check
        _
      $region30: #{tpu_custom_call.1} parent=5 // pred_check_branch
        %218 = sbr.rel (%p215) target = $region32
      $region31: #{tpu_custom_call.1} parent=5 // pred_region
        %s219 = ssub.s32 %s18, 1
        // Predicated region
        $region33: #{tpu_custom_call.1} parent=31 // pred_check
          %p220 = pneg %p39
        $region34: #{tpu_custom_call.1} parent=31 // pred_check_branch
          %222 = sbr.rel (%p220) target = $region36
        $region35: #{tpu_custom_call.1} parent=31 // pred_region
          %223 = dma.done [#allocation4], 16
        $region36: #{tpu_custom_call.1} parent=31 // pred_fallthru
          _
        %s224 = sand.u32 %s52, 1
        %s225 = scalar_lea.sflag [#allocation3], %s224
        %s226 = sand.u32 %s52, 1
        %s227 = smul.addr %s226, 16
        %s228 = scalar_lea.vmem [#allocation5], %s227
        // Predicated region
        $region37: #{tpu_custom_call.1} parent=31 // pred_check
          %p229 = pneg %p65
        $region38: #{tpu_custom_call.1} parent=31 // pred_check_branch
          %231 = sbr.rel (%p229) target = $region40
        $region39: #{tpu_custom_call.1} parent=31 // pred_region
          %232 = dma.done %s225, 256
        $region40: #{tpu_custom_call.1} parent=31 // pred_fallthru
          _
        %s233 = sand.u32 %s78, 1
        %s234 = scalar_lea.sflag [#allocation7], %s233
        %s235 = sand.u32 %s78, 1
        %s236 = smul.addr %s235, 32
        %s237 = scalar_lea.vmem [#allocation6], %s236
        // Predicated region
        $region41: #{tpu_custom_call.1} parent=31 // pred_check
          %p238 = pneg %p91
        $region42: #{tpu_custom_call.1} parent=31 // pred_check_branch
          %240 = sbr.rel (%p238) target = $region44
        $region43: #{tpu_custom_call.1} parent=31 // pred_region
          %241 = dma.done %s234, 512
        $region44: #{tpu_custom_call.1} parent=31 // pred_fallthru
          _
        %242 = sfence
        %p243 = pneg %p39
        %p244 = pneg %p36
        %s245 = sand.u32 %s52, 1
        %s246 = scalar_lea.sflag [#allocation3], %s245
        %s247 = sand.u32 %s52, 1
        %s248 = smul.addr %s247, 16
        %s249 = scalar_lea.vmem [#allocation5], %s248
        %p250 = pneg %p65
        %p251 = pneg %p62
        %s252 = sand.u32 %s78, 1
        %s253 = scalar_lea.sflag [#allocation7], %s252
        %s254 = sand.u32 %s78, 1
        %s255 = smul.addr %s254, 32
        %s256 = scalar_lea.vmem [#allocation6], %s255
        %p257 = pneg %p91
        %p258 = pneg %p88
        %p259 = pneg %p117
        %p260 = pneg %p114
        %p261 = scmp.lt.s32.totalorder %s23, 1
        %s262 = scalar_select %p261, %s23, 1
        %s263 = smul.addr %s262, 9
        %s264 = smul.addr %s263, 8
        %s265 = scalar_lea.vmem %s3, %s264
        %p266 = pneg %p143
        %p267 = pneg %p140
        %p268 = scmp.lt.s32.totalorder %s23, 1
        %s269 = scalar_select %p268, %s23, 1
        %s270 = smul.addr %s269, 4
        %s271 = scalar_lea.vmem %s4, %s270
        %p272 = scmp.lt.s32.totalorder %s23, 1
        %s273 = scalar_select %p272, %s23, 1
        %s274 = smul.addr %s273, 9
        %s275 = smul.addr %s274, 8
        %s276 = scalar_lea.vmem %s3, %s275
        %p277 = scmp.lt.s32.totalorder %s23, 1
        %s278 = scalar_select %p277, %s23, 1
        %s279 = smul.addr %s278, 4
        %s280 = scalar_lea.vmem %s4, %s279
        %v281 = vld [vmem:[%s228] sm:$0xff]
        %vm282 = vcmask 64512
        %283 = vst.msk [vmem:[%s276] sm:$0xff] %vm282, %v281
        %285 = vrot.lane.b32.xlu0 %v281, 124
        %v286 = vpop.permute.xlu0 %285
        %s288 = scalar_lea.vmem %s276, 8
        %289 = vst.msk [vmem:[%s288] sm:$0xff] %vm282, %v286
        %290 = vrot.lane.b32.xlu0 %v281, 120
        %v291 = vpop.permute.xlu0 %290
        %s293 = scalar_lea.vmem %s276, 16
        %294 = vst.msk [vmem:[%s293] sm:$0xff] %vm282, %v291
        %v295 = vld [vmem:[%s228 + $0x4] sm:$0xff]
        %s296 = scalar_lea.vmem %s276, 24
        %297 = vst.msk [vmem:[%s296] sm:$0xff] %vm282, %v295
        %299 = vrot.lane.b32.xlu0 %v295, 124
        %v300 = vpop.permute.xlu0 %299
        %s302 = scalar_lea.vmem %s276, 32
        %303 = vst.msk [vmem:[%s302] sm:$0xff] %vm282, %v300
        %304 = vrot.lane.b32.xlu0 %v295, 120
        %v305 = vpop.permute.xlu0 %304
        %s307 = scalar_lea.vmem %s276, 40
        %308 = vst.msk [vmem:[%s307] sm:$0xff] %vm282, %v305
        %v309 = vld [vmem:[%s228 + $0x8] sm:$0xff]
        %s310 = scalar_lea.vmem %s276, 48
        %311 = vst.msk [vmem:[%s310] sm:$0xff] %vm282, %v309
        %313 = vrot.lane.b32.xlu0 %v309, 124
        %v314 = vpop.permute.xlu0 %313
        %s316 = scalar_lea.vmem %s276, 56
        %317 = vst.msk [vmem:[%s316] sm:$0xff] %vm282, %v314
        %318 = vrot.lane.b32.xlu0 %v309, 120
        %v319 = vpop.permute.xlu0 %318
        %s321 = scalar_lea.vmem %s276, 64
        %322 = vst.msk [vmem:[%s321] sm:$0xff] %vm282, %v319
        %v323 = vld [vmem:[%s237] sm:$0xff]
        %vm324 = vcmask 130048
        %v325 = vsel %vm324, %v323, 0.0
        %v326 = vrot.slane %v325, 4
        %v327 = vadd.f32 %v325, %v326
        %v328 = vrot.slane %v327, 2
        %v329 = vadd.f32 %v327, %v328
        %v330 = vrot.slane %v329, 1
        %v331 = vadd.f32 %v329, %v330
        %v332 = vld [vmem:[%s237 + $0x4] sm:$0xff]
        %v333 = vsel %vm324, %v332, 0.0
        %v334 = vrot.slane %v333, 4
        %v335 = vadd.f32 %v333, %v334
        %v336 = vrot.slane %v335, 2
        %v337 = vadd.f32 %v335, %v336
        %v338 = vrot.slane %v337, 1
        %v339 = vadd.f32 %v337, %v338
        %v340 = vld [vmem:[%s237 + $0x8] sm:$0xff]
        %v341 = vsel %vm324, %v340, 0.0
        %v342 = vrot.slane %v341, 4
        %v343 = vadd.f32 %v341, %v342
        %v344 = vrot.slane %v343, 2
        %v345 = vadd.f32 %v343, %v344
        %v346 = vrot.slane %v345, 1
        %v347 = vadd.f32 %v345, %v346
        %vm348 = vcmask 1040384
        %v349 = vsel %vm348, %v331, %v339
        %vm350 = vcmask 1041408
        %v351 = vsel %vm350, %v349, %v347
        %vm352 = vcmask 59392
        %v353 = vsel %vm352, %v351, 0.0
        %354 = vadd.xlane.f32.xlu0 %v353
        %v355 = vpop.xlane.xlu0 %354
        %357 = vrot.lane.b32.xlu0 %v351, 124
        %v358 = vpop.permute.xlu0 %357
        %v360 = vsel %vm352, %v358, 0.0
        %361 = vadd.xlane.f32.xlu0 %v360
        %v362 = vpop.xlane.xlu0 %361
        %363 = vrot.lane.b32.xlu0 %v351, 120
        %v364 = vpop.permute.xlu0 %363
        %v366 = vsel %vm352, %v364, 0.0
        %367 = vadd.xlane.f32.xlu0 %v366
        %v368 = vpop.xlane.xlu0 %367
        %vm369 = vcmask 7168
        %v370 = vsel %vm369, %v355, %v362
        %vm371 = vcmask 15360
        %v372 = vsel %vm371, %v370, %v368
        %v373 = vmul.f32 %v372, 0.015625
        %s374 = sld [smem:[#allocation2]]
        %v375 = vstv %s374
        %vm376 = vcmp.gt.f32.partialorder %v373, %v375
        %s377 = scalar_lea.vmem %s237, 16 [#allocation6]
        %v378 = vld [vmem:[%s377] sm:$0xff]
        %v379 = vsel %vm324, %v378, 0.0
        %v380 = vrot.slane %v379, 4
        %v381 = vadd.f32 %v379, %v380
        %v382 = vrot.slane %v381, 2
        %v383 = vadd.f32 %v381, %v382
        %v384 = vrot.slane %v383, 1
        %v385 = vadd.f32 %v383, %v384
        %v386 = vld [vmem:[%s377 + $0x4] sm:$0xff]
        %v387 = vsel %vm324, %v386, 0.0
        %v388 = vrot.slane %v387, 4
        %v389 = vadd.f32 %v387, %v388
        %v390 = vrot.slane %v389, 2
        %v391 = vadd.f32 %v389, %v390
        %v392 = vrot.slane %v391, 1
        %v393 = vadd.f32 %v391, %v392
        %v394 = vld [vmem:[%s377 + $0x8] sm:$0xff]
        %v395 = vsel %vm324, %v394, 0.0
        %v396 = vrot.slane %v395, 4
        %v397 = vadd.f32 %v395, %v396
        %v398 = vrot.slane %v397, 2
        %v399 = vadd.f32 %v397, %v398
        %v400 = vrot.slane %v399, 1
        %v401 = vadd.f32 %v399, %v400
        %v402 = vsel %vm348, %v385, %v393
        %v403 = vsel %vm350, %v402, %v401
        %v404 = vsel %vm352, %v403, 0.0
        %405 = vadd.xlane.f32.xlu0 %v404
        %v406 = vpop.xlane.xlu0 %405
        %408 = vrot.lane.b32.xlu0 %v403, 124
        %v409 = vpop.permute.xlu0 %408
        %v411 = vsel %vm352, %v409, 0.0
        %412 = vadd.xlane.f32.xlu0 %v411
        %v413 = vpop.xlane.xlu0 %412
        %414 = vrot.lane.b32.xlu0 %v403, 120
        %v415 = vpop.permute.xlu0 %414
        %v417 = vsel %vm352, %v415, 0.0
        %418 = vadd.xlane.f32.xlu0 %v417
        %v419 = vpop.xlane.xlu0 %418
        %v420 = vsel %vm369, %v406, %v413
        %v421 = vsel %vm371, %v420, %v419
        %v422 = vmul.f32 %v421, 0.015625
        %s423 = sld [smem:[#allocation2 + $0x1]]
        %v424 = vstv %s423
        %vm425 = vcmp.gt.f32.partialorder %v422, %v424
        %vm426 = vmand %vm376, %vm425
        %v427 = vsel %vm426, 1, 0
        %vm428 = vcmask 18432
        %429 = vst.msk [vmem:[%s280] sm:$0x7] %vm428, %v427
        %p430 = scmp.lt.s32.totalorder %s23, 1
        %s431 = scalar_select %p430, %s23, 1
        %s432 = smul.addr %s431, 9
        %s433 = smul.addr %s432, 8
        %s434 = scalar_lea.vmem %s3, %s433
        %p435 = scmp.lt.s32.totalorder %s23, 1
        %s436 = scalar_select %p435, %s23, 1
        %s437 = smul.addr %s436, 4
        %s438 = scalar_lea.vmem %s4, %s437
        // Predicated region
        $region45: #{tpu_custom_call.1} parent=31 // pred_check
          %p439 = pneg %p114
        $region46: #{tpu_custom_call.1} parent=31 // pred_check_branch
          %441 = sbr.rel (%p439) target = $region48
        $region47: #{tpu_custom_call.1} parent=31 // pred_region
          _
        $region48: #{tpu_custom_call.1} parent=31 // pred_fallthru
          _
        // Predicated region
        $region49: #{tpu_custom_call.1} parent=31 // pred_check
          %p442 = pneg %p140
        $region50: #{tpu_custom_call.1} parent=31 // pred_check_branch
          %444 = sbr.rel (%p442) target = $region52
        $region51: #{tpu_custom_call.1} parent=31 // pred_region
          _
        $region52: #{tpu_custom_call.1} parent=31 // pred_fallthru
          _
      $region32: #{tpu_custom_call.1} parent=5 // pred_fallthru
        _
      %p445 = scmp.le.s32.totalorder 2, %s18
      // Predicated region
      $region53: #{tpu_custom_call.1} parent=5 // pred_check
        %p446 = pneg %p445
      $region54: #{tpu_custom_call.1} parent=5 // pred_check_branch
        %448 = sbr.rel (%p446) target = $region56
      $region55: #{tpu_custom_call.1} parent=5 // pred_region
        %s449 = ssub.s32 %s18, 2
        // Predicated region
        $region57: #{tpu_custom_call.1} parent=55 // pred_check
          %p450 = pneg %p120
        $region58: #{tpu_custom_call.1} parent=55 // pred_check_branch
          %452 = sbr.rel (%p450) target = $region60
        $region59: #{tpu_custom_call.1} parent=55 // pred_region
          %p453 = scmp.lt.s32.totalorder %s24, 1
          %s454 = scalar_select %p453, %s24, 1
          %s455 = smul.addr %s454, 9
          %s456 = smul.addr %s455, 8
          %s457 = scalar_lea.vmem %s3, %s456
        $region60: #{tpu_custom_call.1} parent=55 // pred_fallthru
          _
        // Predicated region
        $region61: #{tpu_custom_call.1} parent=55 // pred_check
          %p458 = pneg %p146
        $region62: #{tpu_custom_call.1} parent=55 // pred_check_branch
          %460 = sbr.rel (%p458) target = $region64
        $region63: #{tpu_custom_call.1} parent=55 // pred_region
          %p461 = scmp.lt.s32.totalorder %s24, 1
          %s462 = scalar_select %p461, %s24, 1
          %s463 = smul.addr %s462, 4
          %s464 = scalar_lea.vmem %s4, %s463
        $region64: #{tpu_custom_call.1} parent=55 // pred_fallthru
          _
      $region56: #{tpu_custom_call.1} parent=5 // pred_fallthru
        _
    $region6: #{tpu_custom_call.1} parent=1 // loop_footer
      %s22 = sadd.s32 1, %s18
    $region7: #{tpu_custom_call.1} parent=1 // loop_footer_branch
      %17 = sbr.rel target = $region3
    $region8: #{tpu_custom_call.1} parent=1 // loop_exit
      _
    %465 = vsyncpa [#allocation3], 1
    %s466 = scalar_lea.sflag [#allocation3], 1
    %467 = vsyncpa %s466, 1
    %468 = vsyncpa [#allocation7], 1
    %s469 = scalar_lea.sflag [#allocation7], 1
    %470 = vsyncpa %s469, 1
    %471 = vsyncpa [#allocation4], 1
    %s472 = scalar_lea.sflag [#allocation4], 1
    %473 = vsyncpa %s472, 1

</llo_original>
